<compile_context>
chip_gen: v7x
topology: tpu7x:2x2x1
jax: 0.10.0
libtpu: 0.0.40
codegen_flags: <defaults>
</compile_context>

<pallas_src>
import math

import jax
import jax.numpy as jnp
from jax.experimental import pallas as pl
from jax.experimental.pallas import tpu as pltpu

_MIB = 1024 * 1024


# ----------------------------------------------------------------------------
# Hardware / planning helpers
# ----------------------------------------------------------------------------
def _round_up(x, m):
    return ((x + m - 1) // m) * m


def _cdiv(a, b):
    return -(-a // b)


def _tpu_vmem_capacity():
    try:
        return int(pltpu.get_tpu_info().vmem_capacity_bytes)
    except Exception:
        return 64 * _MIB  # conservative (v7x-sized) fallback


def _num_tensorcores():
    # 2 TensorCores per chip on v7x (and megacore v4/v5p); 1 on v5e/v6e.
    try:
        kind = jax.devices()[0].device_kind.lower()
    except Exception:
        return 1
    if "v7" in kind or "7x" in kind or "v4" in kind or "v5p" in kind:
        return 2
    return 1


def _fold_factor(D):
    """Rows folded into lanes so the trailing block dim is lane-dense (>=128)."""
    if D < 128 and 128 % D == 0:
        return 128 // D
    return 1


def _plan(N, D, K, itemsize, *, att):
    """Pick fold factor, lane width, row tile, grid and VMEM limit."""
    f = _fold_factor(D)
    if f > 1:
        fD = 128                      # exactly one vreg-width of lanes
        lane_pad = 0
    else:
        fD = _round_up(D, 128)        # unmasked stores need a 128-multiple
        lane_pad = fD - D

    nf = _cdiv(N, f)                  # folded row count
    row_pad = nf * f - N              # non-zero only when N % f != 0

    # Per-row VMEM bytes: K inputs + 1 output, double buffered, input dtype;
    # plus in-kernel f32 temporaries (att ~3 live tiles: x upcast, prob
    # broadcast, accumulator; mean ~2: x upcast, accumulator).
    temp_tiles = 3 if att else 2
    bytes_per_row = 2 * (K + 1) * fD * itemsize + temp_tiles * fD * 4

    vmem_cap = _tpu_vmem_capacity()
    if vmem_cap >= 96 * _MIB:         # v5e / v6e: 128 MiB physical VMEM
        block_budget = 40 * _MIB
    else:                             # v7x: 64 MiB physical VMEM
        block_budget = 24 * _MIB
    vmem_limit = int(min(vmem_cap * 3 // 4, 64 * _MIB))

    tn = (block_budget // bytes_per_row) // 8 * 8
    tn = max(8, min(tn, 4096))
    if tn >= nf:
        tn = nf                       # single exact block (full-dim rows are legal)

    # On 2-TensorCore parts aim for >= 2 grid steps per core so the "parallel"
    # axis can shard and each core still overlaps DMA with compute.
    num_tc = _num_tensorcores()
    if num_tc >= 2:
        target_steps = min(2 * num_tc, max(1, _cdiv(nf, 8)))
        while _cdiv(nf, tn) < target_steps and tn > 8:
            tn = max(8, _round_up(tn // 2, 8))

    grid = _cdiv(nf, tn)
    return f, fD, lane_pad, row_pad, nf, tn, grid, vmem_limit


def _prepare(x, f, lane_pad, row_pad, nf):
    """Fold rows into lanes; pad only when strictly required (no-op otherwise)."""
    N, D = x.shape
    if row_pad:
        x = jnp.pad(x, ((0, row_pad), (0, 0)))
    if f > 1:
        x = x.reshape(nf, f * D)      # free row-major merge
    if lane_pad:
        x = jnp.pad(x, ((0, 0), (0, lane_pad)))
    return x


def _restore(out, N, D, f, lane_pad):
    if f > 1:
        out = out.reshape(-1, D)      # free reshape back to (nf*f, D)
        if out.shape[0] != N:
            out = out[:N]
        return out
    if lane_pad:
        out = out[:, :D]
    return out


# ----------------------------------------------------------------------------
# Kernels (factories closed over K = number of components, f = fold factor)
# ----------------------------------------------------------------------------
def _make_mean_kernel(K):
    inv_k = 1.0 / float(K)

    def kernel(*refs):
        x_refs, o_ref = refs[:K], refs[K]
        acc = x_refs[0][...].astype(jnp.float32)
        for r in x_refs[1:]:
            acc = acc + r[...].astype(jnp.float32)
        o_ref[...] = (acc * inv_k).astype(o_ref.dtype)

    return kernel


def _make_att_kernel(K, f):
    def kernel(*refs):
        x_refs = refs[:K]
        if f > 1:
            wp_ref, e_ref, o_ref = refs[K], refs[K + 1], refs[K + 2]
            wp = wp_ref[...]                                   # (fD, f) block-diag w
        else:
            w_ref, o_ref = refs[K], refs[K + 1]
            w = w_ref[...].astype(jnp.float32)                 # (1, fD)

        # ---- pass 1: per-row, per-component scores (only (tn,f) temps live) --
        scores = []
        for k in range(K):
            x = x_refs[k][...].astype(jnp.float32)
            if f > 1:
                s = jnp.dot(x, wp, preferred_element_type=jnp.float32)   # (tn, f)
            else:
                s = jnp.sum(x * w, axis=-1, keepdims=True)               # (tn, 1)
            scores.append(s)

        m = scores[0]
        for s in scores[1:]:
            m = jnp.maximum(m, s)
        exps = [jnp.exp(s - m) for s in scores]
        denom = exps[0]
        for ex in exps[1:]:
            denom = denom + ex
        inv = 1.0 / denom                                                # (tn, f)

        # ---- pass 2: weighted sum, re-reading refs (one upcast tile live) ---
        acc = None
        for k in range(K):
            x = x_refs[k][...].astype(jnp.float32)
            pk = exps[k] * inv                                           # (tn, f)
            if f > 1:
                pk = jnp.dot(pk, e_ref[...],
                             preferred_element_type=jnp.float32)         # (tn, fD)
            contrib = x * pk                                             # bcast if f==1
            acc = contrib if acc is None else acc + contrib
        o_ref[...] = acc.astype(o_ref.dtype)

    return kernel


# ----------------------------------------------------------------------------
# Wrappers
# ----------------------------------------------------------------------------
def mean_pool(logits_list):
    K = len(logits_list)
    N, D = logits_list[0].shape
    dtype = logits_list[0].dtype
    itemsize = jnp.dtype(dtype).itemsize
    f, fD, lane_pad, row_pad, nf, tn, grid, vmem_limit = _plan(
        N, D, K, itemsize, att=False)
    xs = [_prepare(x, f, lane_pad, row_pad, nf) for x in logits_list]

    in_specs = [pl.BlockSpec((tn, fD), lambda i: (i, 0)) for _ in range(K)]
    out = pl.pallas_call(
        _make_mean_kernel(K),
        out_shape=jax.ShapeDtypeStruct((nf, fD), dtype),
        grid_spec=pltpu.PrefetchScalarGridSpec(
            num_scalar_prefetch=0,
            grid=(grid,),
            in_specs=in_specs,
            out_specs=pl.BlockSpec((tn, fD), lambda i: (i, 0)),
        ),
        compiler_params=pltpu.CompilerParams(
            # TODO(synk): on v7x verify "parallel" shards the 1-D grid across
            # both TensorCores; otherwise switch to pltpu.CORE_PARALLEL.
            dimension_semantics=("parallel",),
            vmem_limit_bytes=vmem_limit,
        ),
        cost_estimate=pl.CostEstimate(
            flops=K * N * D,
            transcendentals=0,
            bytes_accessed=(K + 1) * N * D * itemsize,
        ),
    )(*xs)
    return _restore(out, N, D, f, lane_pad)


def att_pool(logits_list, w):
    K = len(logits_list)
    N, D = logits_list[0].shape
    dtype = logits_list[0].dtype
    itemsize = jnp.dtype(dtype).itemsize
    f, fD, lane_pad, row_pad, nf, tn, grid, vmem_limit = _plan(
        N, D, K, itemsize, att=True)
    xs = [_prepare(x, f, lane_pad, row_pad, nf) for x in logits_list]

    w32 = w.astype(jnp.float32).reshape(-1)                              # (D,)
    in_specs = [pl.BlockSpec((tn, fD), lambda i: (i, 0)) for _ in range(K)]
    if f > 1:
        # Segmented score-reduce / prob-broadcast as tiny block-diag matrices
        # (only needed when several original rows share the lane axis).
        wp = jnp.kron(jnp.eye(f, dtype=jnp.float32), w32[:, None])       # (fD, f)
        e = jnp.kron(jnp.eye(f, dtype=jnp.float32),
                     jnp.ones((1, D), jnp.float32))                      # (f, fD)
        extra = [wp, e]
        in_specs += [pl.BlockSpec((fD, f), lambda i: (0, 0)),
                     pl.BlockSpec((f, fD), lambda i: (0, 0))]
    else:
        w_row = w32[None, :]
        if lane_pad:
            w_row = jnp.pad(w_row, ((0, 0), (0, lane_pad)))              # (1, fD)
        extra = [w_row]
        in_specs += [pl.BlockSpec((1, fD), lambda i: (0, 0))]

    out = pl.pallas_call(
        _make_att_kernel(K, f),
        out_shape=jax.ShapeDtypeStruct((nf, fD), dtype),
        grid_spec=pltpu.PrefetchScalarGridSpec(
            num_scalar_prefetch=0,
            grid=(grid,),
            in_specs=in_specs,
            out_specs=pl.BlockSpec((tn, fD), lambda i: (i, 0)),
        ),
        compiler_params=pltpu.CompilerParams(
            dimension_semantics=("parallel",),
            vmem_limit_bytes=vmem_limit,
        ),
        cost_estimate=pl.CostEstimate(
            flops=4 * K * N * D,
            transcendentals=K * N,
            bytes_accessed=(K + 1) * N * D * itemsize,
        ),
    )(*xs, *extra)
    return _restore(out, N, D, f, lane_pad)


class NaiveTeacher:
    """JAX/Pallas port of NaiveTeacher (pooling_type in {'mean', 'att'})."""

    def __init__(self, input_dim, pooling_type="mean", key=None):
        self.att_w = None
        if pooling_type == "att":
            # nn.Linear(input_dim, 1, bias=False): weight (1, input_dim),
            # torch default init U(-1/sqrt(D), 1/sqrt(D)).
            bound = 1.0 / math.sqrt(input_dim)
            if key is None:
                key = jax.random.PRNGKey(42)
            self.att_w = jax.random.uniform(
                key, (1, input_dim), jnp.float32, minval=-bound, maxval=bound
            )

    def __call__(self, logits_list):
        logits_list = list(logits_list)
        if self.att_w is not None:
            out = att_pool(logits_list, self.att_w)
        else:
            out = mean_pool(logits_list)
        # match torch .squeeze() (no-op for N, D > 1)
        return jnp.squeeze(out)


# ----------------------------------------------------------------------------
# Pure-JAX references for verification
# ----------------------------------------------------------------------------
def _ref_mean(logits_list):
    x = jnp.stack(list(logits_list), axis=1)
    return jnp.squeeze(jnp.mean(x, axis=1))


def _ref_att(logits_list, w):
    x = jnp.stack(list(logits_list), axis=1)            # (N, K, D)
    h = jnp.einsum("nkd,od->nko", x, w)                  # (N, K, 1)
    h = jax.nn.softmax(h, axis=1)
    h = jnp.swapaxes(h, 1, 2)                            # (N, 1, K)
    h = jnp.matmul(h, x)                                 # (N, 1, D)
    return jnp.squeeze(h)


if __name__ == "__main__":
    # --- case 1: small D (lane-folded path), N=16, K=3, D=32 ---
    N, K, D = 16, 3, 32
    key = jax.random.PRNGKey(0)
    keys = jax.random.split(key, K)
    logits_list = [jax.random.normal(k, (N, D), jnp.float32) for k in keys]

    teacher_mean = NaiveTeacher(D, pooling_type="mean")
    out_mean = jax.block_until_ready(teacher_mean(logits_list))
    assert out_mean.shape == (N, D)
    assert jnp.allclose(out_mean, _ref_mean(logits_list), atol=1e-5, rtol=1e-5)

    teacher_att = NaiveTeacher(D, pooling_type="att", key=jax.random.PRNGKey(1))
    out_att = jax.block_until_ready(teacher_att(logits_list))
    assert out_att.shape == (N, D)
    assert jnp.allclose(out_att, _ref_att(logits_list, teacher_att.att_w),
                        atol=1e-5, rtol=1e-5)

    # --- case 2: wide D (no fold, VPU score path), ragged N, K=2 ---
    N2, K2, D2 = 20, 2, 256
    keys2 = jax.random.split(jax.random.PRNGKey(2), K2)
    logits2 = [jax.random.normal(k, (N2, D2), jnp.float32) for k in keys2]

    t_mean2 = NaiveTeacher(D2, pooling_type="mean")
    o_mean2 = jax.block_until_ready(t_mean2(logits2))
    assert o_mean2.shape == (N2, D2)
    assert jnp.allclose(o_mean2, _ref_mean(logits2), atol=1e-5, rtol=1e-5)

    t_att2 = NaiveTeacher(D2, pooling_type="att", key=jax.random.PRNGKey(3))
    o_att2 = jax.block_until_ready(t_att2(logits2))
    assert o_att2.shape == (N2, D2)
    assert jnp.allclose(o_att2, _ref_att(logits2, t_att2.att_w),
                        atol=1e-5, rtol=1e-5)

    print("KERNEL_OK")
</pallas_src>

<mosaic_0001>
module attributes {stable_mosaic.version = 11 : i64} {
  func.func @kernel(%arg0: i32, %arg1: memref<4x128xf32, #tpu.memory_space<vmem>>, %arg2: memref<4x128xf32, #tpu.memory_space<vmem>>, %arg3: memref<4x128xf32, #tpu.memory_space<vmem>>, %arg4: memref<4x128xf32, #tpu.memory_space<vmem>>) attributes {dimension_semantics = [#tpu.dimension_semantics<parallel>], iteration_bounds = array<i64: 1>, scalar_prefetch = 0 : i64, scratch_operands = 0 : i64, tpu.core_type = #tpu.core_type<tc>, window_params = [{transform_indices = @transform_0, window_bounds = array<i64: 4, 128>}, {transform_indices = @transform_1, window_bounds = array<i64: 4, 128>}, {transform_indices = @transform_2, window_bounds = array<i64: 4, 128>}, {transform_indices = @transform_3, window_bounds = array<i64: 4, 128>}]} {
    %c0 = arith.constant 0 : index
    %c0_0 = arith.constant 0 : index
    %0 = vector.load %arg1[%c0, %c0_0] : memref<4x128xf32, #tpu.memory_space<vmem>>, vector<4x128xf32>
    %c0_1 = arith.constant 0 : index
    %c0_2 = arith.constant 0 : index
    %1 = vector.load %arg2[%c0_1, %c0_2] : memref<4x128xf32, #tpu.memory_space<vmem>>, vector<4x128xf32>
    %2 = arith.addf %0, %1 : vector<4x128xf32>
    %c0_3 = arith.constant 0 : index
    %c0_4 = arith.constant 0 : index
    %3 = vector.load %arg3[%c0_3, %c0_4] : memref<4x128xf32, #tpu.memory_space<vmem>>, vector<4x128xf32>
    %4 = arith.addf %2, %3 : vector<4x128xf32>
    %cst = arith.constant 0.333333343 : f32
    %5 = vector.broadcast %cst : f32 to vector<4x128xf32>
    %6 = arith.mulf %4, %5 : vector<4x128xf32>
    %c0_5 = arith.constant 0 : index
    %c0_6 = arith.constant 0 : index
    %7 = vector.load %arg4[%c0_5, %c0_6] : memref<4x128xf32, #tpu.memory_space<vmem>>, vector<4x128xf32>
    tpu.vector_store %arg4[%c0_5, %c0_6], %6 {strides = array<i32>} : memref<4x128xf32, #tpu.memory_space<vmem>>, vector<4x128xf32>,
    return
  }
  func.func @transform_0(%arg0: i32) -> (i32, i32) {
    %c0_i32 = arith.constant 0 : i32
    %c0_i32_0 = arith.constant 0 : i32
    return %arg0, %c0_i32 : i32, i32
  }
  func.func @transform_1(%arg0: i32) -> (i32, i32) {
    %c0_i32 = arith.constant 0 : i32
    %c0_i32_0 = arith.constant 0 : i32
    return %arg0, %c0_i32 : i32, i32
  }
  func.func @transform_2(%arg0: i32) -> (i32, i32) {
    %c0_i32 = arith.constant 0 : i32
    %c0_i32_0 = arith.constant 0 : i32
    return %arg0, %c0_i32 : i32, i32
  }
  func.func @transform_3(%arg0: i32) -> (i32, i32) {
    %c0_i32 = arith.constant 0 : i32
    %c0_i32_0 = arith.constant 0 : i32
    return %arg0, %c0_i32 : i32, i32
  }
}

</mosaic_0001>

<llo_original>
// kernel: tpu_custom_call.1
$region0: #{tpu_custom_call.1}
  #allocation0 [shape = 'u32[]', space=smem, size = 0x4, offset = 0x4, fixed_abs, tag = 'smem constant byte address 0x4 - core index']
  #allocation1 [shape = 'u32[144,128]{1,0:T(1,128)}', space=vmem, size = 0x12000, scoped, tag = 'internal scratch']
  %s0 = inlined_call_operand.hbm [shape: f32[4,128], index: 0, kind: input, shape index: {}]
  %s1 = inlined_call_operand.hbm [shape: f32[4,128], index: 1, kind: input, shape index: {}]
  %s2 = inlined_call_operand.vmem [shape: f32[4,128], index: 2, kind: input, shape index: {}]
  %s3 = inlined_call_operand.hbm [shape: f32[4,128], index: 3, kind: output, shape index: {}]
  %s4 = sld [smem:[#allocation0]]
  $region30: #{tpu_custom_call.1} parent=0
    _
  %s6 = ssub.s32 1, %s4
  %s7 = scalar_select 0, %s6, %s4
  $region1: #{tpu_custom_call.1} parent=0
    #allocation2 [shape = 'u8[2048]{0}', space=vmem, size = 0x800, scoped, tag = 'input window, operand 0, single buffered']
    #allocation3 [shape = 's32[1]{0}', space=sflag, size = 0x4, scoped, tag = 'scoped memory for tpu_custom_call.1']
    #allocation4 [shape = 's32[1]{0}', space=sflag, size = 0x4, scoped, tag = 'scoped memory for tpu_custom_call.1']
    #allocation5 [shape = 'u8[2048]{0}', space=vmem, size = 0x800, scoped, tag = 'input window, operand 1, single buffered']
    #allocation6 [shape = 's32[1]{0}', space=sflag, size = 0x4, scoped, tag = 'scoped memory for tpu_custom_call.1']
    #allocation7 [shape = 'u8[2048]{0}', space=vmem, size = 0x800, scoped, tag = 'output window, operand 0, single buffered']
    %8 = vsyncpa [#allocation3], 0
    %9 = vsyncpa [#allocation6], 0
    %10 = vsyncpa [#allocation4], 0
    // Predicated region
    $region2: #{tpu_custom_call.1} parent=1 // pred_check
      _
    $region3: #{tpu_custom_call.1} parent=1 // pred_check_branch
      %12 = sbr.rel (0) target = $region5
    $region4: #{tpu_custom_call.1} parent=1 // pred_region
      %s14 = ssub.s32 64, 64
      %15 = vsyncadd [#allocation3], %s14
      %s17 = sshll.u32 [#allocation2], 4
      %s18 = int_to_ptr.vmem [resolvable:$true] %s17
      %20 = dma.hbm_to_vmem [thread:$0]  %s0, 64, %s18, [#allocation3]
    $region5: #{tpu_custom_call.1} parent=1 // pred_fallthru
      _
    // Predicated region
    $region6: #{tpu_custom_call.1} parent=1 // pred_check
      _
    $region7: #{tpu_custom_call.1} parent=1 // pred_check_branch
      %22 = sbr.rel (0) target = $region9
    $region8: #{tpu_custom_call.1} parent=1 // pred_region
      %s24 = ssub.s32 64, 64
      %25 = vsyncadd [#allocation6], %s24
      %s27 = sshll.u32 [#allocation5], 4
      %s28 = int_to_ptr.vmem [resolvable:$true] %s27
      %30 = dma.hbm_to_vmem [thread:$0]  %s1, 64, %s28, [#allocation6]
    $region9: #{tpu_custom_call.1} parent=1 // pred_fallthru
      _
    // Predicated region
    $region10: #{tpu_custom_call.1} parent=1 // pred_check
      _
    $region11: #{tpu_custom_call.1} parent=1 // pred_check_branch
      %32 = sbr.rel (0) target = $region13
    $region12: #{tpu_custom_call.1} parent=1 // pred_region
      _
    $region13: #{tpu_custom_call.1} parent=1 // pred_fallthru
      _
    // Predicated region
    $region14: #{tpu_custom_call.1} parent=1 // pred_check
      _
    $region15: #{tpu_custom_call.1} parent=1 // pred_check_branch
      %34 = sbr.rel (0) target = $region17
    $region16: #{tpu_custom_call.1} parent=1 // pred_region
      %35 = dma.done [#allocation3], 64
    $region17: #{tpu_custom_call.1} parent=1 // pred_fallthru
      _
    // Predicated region
    $region18: #{tpu_custom_call.1} parent=1 // pred_check
      _
    $region19: #{tpu_custom_call.1} parent=1 // pred_check_branch
      %37 = sbr.rel (0) target = $region21
    $region20: #{tpu_custom_call.1} parent=1 // pred_region
      %38 = dma.done [#allocation6], 64
    $region21: #{tpu_custom_call.1} parent=1 // pred_fallthru
      _
    %v39 = vld [vmem:[#allocation2] sm:$0xf]
    %v40 = vld [vmem:[#allocation5] sm:$0xf]
    %v41 = vadd.f32 %v39, %v40
    %v42 = vld [vmem:[%s2] sm:$0xf]
    %v43 = vadd.f32 %v41, %v42
    %v44 = vmul.f32 %v43, 0.33333334
    %45 = vst [vmem:[#allocation7] sm:$0xf] %v44
    // Predicated region
    $region22: #{tpu_custom_call.1} parent=1 // pred_check
      _
    $region23: #{tpu_custom_call.1} parent=1 // pred_check_branch
      %47 = sbr.rel (0) target = $region25
    $region24: #{tpu_custom_call.1} parent=1 // pred_region
      %s49 = ssub.s32 64, 64
      %50 = vsyncadd [#allocation4], %s49
      %s52 = sshll.u32 [#allocation7], 4
      %s53 = int_to_ptr.vmem [resolvable:$true] %s52
      %55 = dma.vmem_to_hbm [thread:$0]  %s53, 64, %s3, [#allocation4]
    $region25: #{tpu_custom_call.1} parent=1 // pred_fallthru
      _
    // Predicated region
    $region26: #{tpu_custom_call.1} parent=1 // pred_check
      _
    $region27: #{tpu_custom_call.1} parent=1 // pred_check_branch
      %57 = sbr.rel (0) target = $region29
    $region28: #{tpu_custom_call.1} parent=1 // pred_region
      %58 = dma.done [#allocation4], 64
    $region29: #{tpu_custom_call.1} parent=1 // pred_fallthru
      _
    %59 = vsyncpa [#allocation3], 1
    %60 = vsyncpa [#allocation6], 1
    %61 = vsyncpa [#allocation4], 1

</llo_original>
